<compile_context>
chip_gen: v7x
topology: tpu7x:2x2x1
jax: 0.10.0
libtpu: 0.0.40
codegen_flags: <defaults>
</compile_context>

<pallas_src>
import jax
import jax.numpy as jnp
from jax.experimental import pallas as pl
from jax.experimental.pallas import tpu as pltpu

IN_DIM = 28 * 28   # 784
HID_DIM = 128
OUT_DIM = 10


def _round_up(n, m):
    return ((n + m - 1) // m) * m


def _model_abs_kernel(x_ref, w0_ref, b0_ref, w1_ref, o_ref):
    # x_ref : (TM, 784)   VMEM (streamed per grid step, double-buffered)
    # w0_ref: (784, 128)  VMEM (resident across grid steps)
    # b0_ref: (1, 128)    VMEM (resident)
    # w1_ref: (128, 10)   VMEM (resident)
    # o_ref : (TM, 10)    VMEM
    h = jnp.dot(x_ref[...], w0_ref[...], preferred_element_type=jnp.float32)
    h = jnp.abs(h + b0_ref[...])          # bias broadcast + Abs (VPU)
    # PerturbationLayer: identity (min=-inf, max=+inf, node_idx=None) -> no-op
    o_ref[...] = jnp.dot(h, w1_ref[...],
                         preferred_element_type=jnp.float32).astype(o_ref.dtype)


def model_abs_forward(x, w0, b0, w1, *, tm=1024):
    """x: (B, 784) f32, w0: (784, 128), b0: (128,), w1: (128, 10) -> (B, 10)."""
    B = x.shape[0]
    b0_2d = b0.reshape(1, HID_DIM)

    # Batch tile: multiple of 8 (sublane), no padding of x or the batch itself.
    TM = min(tm, _round_up(max(B, 8), 8))
    # v7x: keep >= 4 grid steps on large batches so the "parallel" batch axis
    # actually shards across both TensorCores (no effect on single-TC v5e/v6e).
    if B >= 512 and pl.cdiv(B, TM) < 4:
        TM = _round_up(pl.cdiv(B, 4), 8)
    n_tiles = pl.cdiv(B, TM)   # ragged last tile: OOB reads padded, OOB writes masked

    cost = pl.CostEstimate(
        flops=2 * B * IN_DIM * HID_DIM + 2 * B * HID_DIM * OUT_DIM,
        transcendentals=0,
        bytes_accessed=4 * (B * IN_DIM + IN_DIM * HID_DIM + HID_DIM
                            + HID_DIM * OUT_DIM + B * OUT_DIM),
    )

    return pl.pallas_call(
        _model_abs_kernel,
        out_shape=jax.ShapeDtypeStruct((B, OUT_DIM), jnp.float32),
        grid_spec=pltpu.PrefetchScalarGridSpec(
            num_scalar_prefetch=0,
            grid=(n_tiles,),
            in_specs=[
                pl.BlockSpec((TM, IN_DIM), lambda i: (i, 0)),            # streamed x
                pl.BlockSpec((IN_DIM, HID_DIM), lambda i: (0, 0)),       # VMEM-resident
                pl.BlockSpec((1, HID_DIM), lambda i: (0, 0)),            # VMEM-resident
                pl.BlockSpec((HID_DIM, OUT_DIM), lambda i: (0, 0)),      # VMEM-resident
            ],
            out_specs=pl.BlockSpec((TM, OUT_DIM), lambda i: (i, 0)),
        ),
        compiler_params=pltpu.CompilerParams(
            dimension_semantics=("parallel",),        # batch tiles shard across TCs on v7x
            vmem_limit_bytes=32 * 1024 * 1024,        # headroom for tm sweeps (esp. v5e)
        ),
        cost_estimate=cost,
    )(x, w0, b0_2d, w1)


if __name__ == "__main__":
    key = jax.random.PRNGKey(0)
    kx, k0, kb, k1 = jax.random.split(key, 4)

    # Deterministic parameter init (uniform, PyTorch-default-Linear scale).
    bound0 = 1.0 / (IN_DIM ** 0.5)
    w0 = jax.random.uniform(k0, (IN_DIM, HID_DIM), minval=-bound0, maxval=bound0,
                            dtype=jnp.float32)
    b0 = jax.random.uniform(kb, (HID_DIM,), minval=-bound0, maxval=bound0,
                            dtype=jnp.float32)
    bound1 = 1.0 / (HID_DIM ** 0.5)
    w1 = jax.random.uniform(k1, (HID_DIM, OUT_DIM), minval=-bound1, maxval=bound1,
                            dtype=jnp.float32)

    ok = True
    # B=8: aligned batch; B=13: exercises the ragged (masked) last-tile path.
    for B in (8, 13):
        x = jax.random.normal(jax.random.fold_in(kx, B), (B, IN_DIM), dtype=jnp.float32)
        y = model_abs_forward(x, w0, b0, w1)
        jax.block_until_ready(y)
        y_ref = jnp.abs(x @ w0 + b0) @ w1   # plain-JAX reference
        ok = ok and (y.shape == (B, OUT_DIM))
        ok = ok and bool(jnp.allclose(y, y_ref, atol=1e-4, rtol=1e-4))

    assert ok
    print("KERNEL_OK")
</pallas_src>

<mosaic_0001>
module attributes {stable_mosaic.version = 11 : i64} {
  func.func @_model_abs_kernel(%arg0: i32, %arg1: memref<8x784xf32, #tpu.memory_space<vmem>>, %arg2: memref<784x128xf32, #tpu.memory_space<vmem>>, %arg3: memref<1x128xf32, #tpu.memory_space<vmem>>, %arg4: memref<128x10xf32, #tpu.memory_space<vmem>>, %arg5: memref<8x10xf32, #tpu.memory_space<vmem>>) attributes {dimension_semantics = [#tpu.dimension_semantics<parallel>], iteration_bounds = array<i64: 1>, scalar_prefetch = 0 : i64, scratch_operands = 0 : i64, tpu.core_type = #tpu.core_type<tc>, window_params = [{transform_indices = @transform_0, window_bounds = array<i64: 8, 784>}, {pipeline_mode = #tpu.pipeline_mode<synchronous>, transform_indices = @transform_1, window_bounds = array<i64: 784, 128>}, {pipeline_mode = #tpu.pipeline_mode<synchronous>, transform_indices = @transform_2, window_bounds = array<i64: 1, 128>}, {pipeline_mode = #tpu.pipeline_mode<synchronous>, transform_indices = @transform_3, window_bounds = array<i64: 128, 10>}, {transform_indices = @transform_4, window_bounds = array<i64: 8, 10>}]} {
    %c0 = arith.constant 0 : index
    %c0_0 = arith.constant 0 : index
    %0 = vector.load %arg1[%c0, %c0_0] : memref<8x784xf32, #tpu.memory_space<vmem>>, vector<8x784xf32>
    %c0_1 = arith.constant 0 : index
    %c0_2 = arith.constant 0 : index
    %1 = vector.load %arg2[%c0_1, %c0_2] : memref<784x128xf32, #tpu.memory_space<vmem>>, vector<784x128xf32>
    %cst = arith.constant dense<0.000000e+00> : vector<8x128xf32>
    %2 = tpu.matmul %0, %1, %cst {dimension_numbers = #tpu.dot_dimension_numbers<[1], [0], [0], [1], [0, 0, 1, 1], [], []>} : vector<8x784xf32>, vector<784x128xf32>, vector<8x128xf32> -> vector<8x128xf32>
    %c0_3 = arith.constant 0 : index
    %c0_4 = arith.constant 0 : index
    %3 = vector.load %arg3[%c0_3, %c0_4] : memref<1x128xf32, #tpu.memory_space<vmem>>, vector<1x128xf32>
    %4 = vector.broadcast %3 : vector<1x128xf32> to vector<8x128xf32>
    %5 = arith.addf %2, %4 : vector<8x128xf32>
    %6 = math.absf %5 : vector<8x128xf32>
    %c0_5 = arith.constant 0 : index
    %c0_6 = arith.constant 0 : index
    %7 = vector.load %arg4[%c0_5, %c0_6] : memref<128x10xf32, #tpu.memory_space<vmem>>, vector<128x10xf32>
    %cst_7 = arith.constant dense<0.000000e+00> : vector<8x10xf32>
    %8 = tpu.matmul %6, %7, %cst_7 {dimension_numbers = #tpu.dot_dimension_numbers<[1], [0], [0], [1], [0, 0, 1, 1], [], []>} : vector<8x128xf32>, vector<128x10xf32>, vector<8x10xf32> -> vector<8x10xf32>
    %c0_8 = arith.constant 0 : index
    %c0_9 = arith.constant 0 : index
    %9 = vector.load %arg5[%c0_8, %c0_9] : memref<8x10xf32, #tpu.memory_space<vmem>>, vector<8x10xf32>
    tpu.vector_store %arg5[%c0_8, %c0_9], %8 {strides = array<i32>} : memref<8x10xf32, #tpu.memory_space<vmem>>, vector<8x10xf32>,
    return
  }
  func.func @transform_0(%arg0: i32) -> (i32, i32) {
    %c0_i32 = arith.constant 0 : i32
    %c0_i32_0 = arith.constant 0 : i32
    return %arg0, %c0_i32 : i32, i32
  }
  func.func @transform_1(%arg0: i32) -> (i32, i32) {
    %c0_i32 = arith.constant 0 : i32
    %c0_i32_0 = arith.constant 0 : i32
    %c0_i32_1 = arith.constant 0 : i32
    return %c0_i32, %c0_i32_0 : i32, i32
  }
  func.func @transform_2(%arg0: i32) -> (i32, i32) {
    %c0_i32 = arith.constant 0 : i32
    %c0_i32_0 = arith.constant 0 : i32
    %c0_i32_1 = arith.constant 0 : i32
    return %c0_i32, %c0_i32_0 : i32, i32
  }
  func.func @transform_3(%arg0: i32) -> (i32, i32) {
    %c0_i32 = arith.constant 0 : i32
    %c0_i32_0 = arith.constant 0 : i32
    %c0_i32_1 = arith.constant 0 : i32
    return %c0_i32, %c0_i32_0 : i32, i32
  }
  func.func @transform_4(%arg0: i32) -> (i32, i32) {
    %c0_i32 = arith.constant 0 : i32
    %c0_i32_0 = arith.constant 0 : i32
    return %arg0, %c0_i32 : i32, i32
  }
}

</mosaic_0001>

<llo_original>
// kernel: tpu_custom_call.1
$region0: #{tpu_custom_call.1}
  #allocation0 [shape = 'u32[]', space=smem, size = 0x4, offset = 0x4, fixed_abs, tag = 'smem constant byte address 0x4 - core index']
  #allocation1 [shape = 'u32[144,128]{1,0:T(1,128)}', space=vmem, size = 0x12000, scoped, tag = 'internal scratch']
  %s0 = inlined_call_operand.vmem [shape: f32[8,784], index: 0, kind: input, shape index: {}]
  %s1 = inlined_call_operand.hbm [shape: f32[784,128], index: 1, kind: input, shape index: {}]
  %s2 = inlined_call_operand.vmem [shape: f32[1,128], index: 2, kind: input, shape index: {}]
  %s3 = inlined_call_operand.vmem [shape: f32[128,10], index: 3, kind: input, shape index: {}]
  %s4 = inlined_call_operand.hbm [shape: f32[8,10], index: 4, kind: output, shape index: {}]
  %s5 = sld [smem:[#allocation0]]
  $region30: #{tpu_custom_call.1} parent=0
    _
  %s7 = ssub.s32 1, %s5
  %s8 = scalar_select 0, %s7, %s5
  $region1: #{tpu_custom_call.1} parent=0
    #allocation2 [shape = 'u8[401408]{0}', space=vmem, size = 0x62000, scoped, tag = 'input window, operand 1, single buffered']
    #allocation3 [shape = 's32[1]{0}', space=sflag, size = 0x4, scoped, tag = 'scoped memory for tpu_custom_call.1']
    #allocation4 [shape = 's32[1]{0}', space=sflag, size = 0x4, scoped, tag = 'scoped memory for tpu_custom_call.1']
    #allocation5 [shape = 'u8[4096]{0}', space=vmem, size = 0x1000, scoped, tag = 'output window, operand 0, single buffered']
    %9 = vsyncpa [#allocation3], 0
    %10 = vsyncpa [#allocation4], 0
    // Predicated region
    $region2: #{tpu_custom_call.1} parent=1 // pred_check
      _
    $region3: #{tpu_custom_call.1} parent=1 // pred_check_branch
      %12 = sbr.rel (0) target = $region5
    $region4: #{tpu_custom_call.1} parent=1 // pred_region
      _
    $region5: #{tpu_custom_call.1} parent=1 // pred_fallthru
      _
    // Predicated region
    $region6: #{tpu_custom_call.1} parent=1 // pred_check
      _
    $region7: #{tpu_custom_call.1} parent=1 // pred_check_branch
      %14 = sbr.rel (0) target = $region9
    $region8: #{tpu_custom_call.1} parent=1 // pred_region
      %s16 = ssub.s32 12544, 12544
      %17 = vsyncadd [#allocation3], %s16
      %s18 = sshll.u32 [#allocation2], 4
      %s19 = int_to_ptr.vmem [resolvable:$true] %s18
      %24 = dma.hbm_to_vmem [thread:$0]  %s1, 12544, %s19, [#allocation3], 128, 128, 8
    $region9: #{tpu_custom_call.1} parent=1 // pred_fallthru
      _
    // Predicated region
    $region10: #{tpu_custom_call.1} parent=1 // pred_check
      _
    $region11: #{tpu_custom_call.1} parent=1 // pred_check_branch
      %26 = sbr.rel (0) target = $region13
    $region12: #{tpu_custom_call.1} parent=1 // pred_region
      _
    $region13: #{tpu_custom_call.1} parent=1 // pred_fallthru
      _
    // Predicated region
    $region14: #{tpu_custom_call.1} parent=1 // pred_check
      _
    $region15: #{tpu_custom_call.1} parent=1 // pred_check_branch
      %28 = sbr.rel (0) target = $region17
    $region16: #{tpu_custom_call.1} parent=1 // pred_region
      _
    $region17: #{tpu_custom_call.1} parent=1 // pred_fallthru
      _
    // Predicated region
    $region18: #{tpu_custom_call.1} parent=1 // pred_check
      _
    $region19: #{tpu_custom_call.1} parent=1 // pred_check_branch
      %30 = sbr.rel (0) target = $region21
    $region20: #{tpu_custom_call.1} parent=1 // pred_region
      %31 = dma.done [#allocation3], 12544
    $region21: #{tpu_custom_call.1} parent=1 // pred_fallthru
      _
    %v32 = vld [vmem:[%s0] sm:$0xff]
    %v33 = vld [vmem:[%s0 + $0x8] sm:$0xff]
    %v34 = vld [vmem:[%s0 + $0x10] sm:$0xff]
    %v35 = vld [vmem:[%s0 + $0x18] sm:$0xff]
    %v36 = vld [vmem:[%s0 + $0x20] sm:$0xff]
    %v37 = vld [vmem:[%s0 + $0x28] sm:$0xff]
    %v38 = vld [vmem:[%s0 + $0x30] sm:$0xff]
    %v39 = vld [vmem:[#allocation2] sm:$0xff]
    %v40 = vld [vmem:[#allocation2 + $0x8] sm:$0xff]
    %v41 = vld [vmem:[#allocation2 + $0x10] sm:$0xff]
    %v42 = vld [vmem:[#allocation2 + $0x18] sm:$0xff]
    %v43 = vld [vmem:[#allocation2 + $0x20] sm:$0xff]
    %v44 = vld [vmem:[#allocation2 + $0x28] sm:$0xff]
    %v45 = vld [vmem:[#allocation2 + $0x30] sm:$0xff]
    %v46 = vld [vmem:[#allocation2 + $0x38] sm:$0xff]
    %v47 = vld [vmem:[#allocation2 + $0x40] sm:$0xff]
    %v48 = vld [vmem:[#allocation2 + $0x48] sm:$0xff]
    %v49 = vld [vmem:[#allocation2 + $0x50] sm:$0xff]
    %v50 = vld [vmem:[#allocation2 + $0x58] sm:$0xff]
    %v51 = vld [vmem:[#allocation2 + $0x60] sm:$0xff]
    %v52 = vld [vmem:[#allocation2 + $0x68] sm:$0xff]
    %v53 = vld [vmem:[#allocation2 + $0x70] sm:$0xff]
    %v54 = vld [vmem:[#allocation2 + $0x78] sm:$0xff]
    %v55 = vld [vmem:[#allocation2 + $0x80] sm:$0xff]
    %v56 = vld [vmem:[#allocation2 + $0x88] sm:$0xff]
    %v57 = vld [vmem:[#allocation2 + $0x90] sm:$0xff]
    %v58 = vld [vmem:[#allocation2 + $0x98] sm:$0xff]
    %v59 = vld [vmem:[#allocation2 + $0xa0] sm:$0xff]
    %v60 = vld [vmem:[#allocation2 + $0xa8] sm:$0xff]
    %v61 = vld [vmem:[#allocation2 + $0xb0] sm:$0xff]
    %v62 = vld [vmem:[#allocation2 + $0xb8] sm:$0xff]
    %v63 = vld [vmem:[#allocation2 + $0xc0] sm:$0xff]
    %v64 = vld [vmem:[#allocation2 + $0xc8] sm:$0xff]
    %v65 = vld [vmem:[#allocation2 + $0xd0] sm:$0xff]
    %v66 = vld [vmem:[#allocation2 + $0xd8] sm:$0xff]
    %v67 = vld [vmem:[#allocation2 + $0xe0] sm:$0xff]
    %v68 = vld [vmem:[#allocation2 + $0xe8] sm:$0xff]
    %v69 = vld [vmem:[#allocation2 + $0xf0] sm:$0xff]
    %v70 = vld [vmem:[#allocation2 + $0xf8] sm:$0xff]
    %v71 = vld [vmem:[#allocation2 + $0x100] sm:$0xff]
    %v72 = vld [vmem:[#allocation2 + $0x108] sm:$0xff]
    %v73 = vld [vmem:[#allocation2 + $0x110] sm:$0xff]
    %v74 = vld [vmem:[#allocation2 + $0x118] sm:$0xff]
    %v75 = vld [vmem:[#allocation2 + $0x120] sm:$0xff]
    %v76 = vld [vmem:[#allocation2 + $0x128] sm:$0xff]
    %v77 = vld [vmem:[#allocation2 + $0x130] sm:$0xff]
    %v78 = vld [vmem:[#allocation2 + $0x138] sm:$0xff]
    %v79 = vld [vmem:[#allocation2 + $0x140] sm:$0xff]
    %v80 = vld [vmem:[#allocation2 + $0x148] sm:$0xff]
    %v81 = vld [vmem:[#allocation2 + $0x150] sm:$0xff]
    %v82 = vld [vmem:[#allocation2 + $0x158] sm:$0xff]
    %v83 = vld [vmem:[#allocation2 + $0x160] sm:$0xff]
    %v84 = vld [vmem:[#allocation2 + $0x168] sm:$0xff]
    %v85 = vld [vmem:[#allocation2 + $0x170] sm:$0xff]
    %v86 = vld [vmem:[#allocation2 + $0x178] sm:$0xff]
    %v87 = vld [vmem:[#allocation2 + $0x180] sm:$0xff]
    %v88 = vld [vmem:[#allocation2 + $0x188] sm:$0xff]
    %v89 = vld [vmem:[#allocation2 + $0x190] sm:$0xff]
    %v90 = vld [vmem:[#allocation2 + $0x198] sm:$0xff]
    %v91 = vld [vmem:[#allocation2 + $0x1a0] sm:$0xff]
    %v92 = vld [vmem:[#allocation2 + $0x1a8] sm:$0xff]
    %v93 = vld [vmem:[#allocation2 + $0x1b0] sm:$0xff]
    %v94 = vld [vmem:[#allocation2 + $0x1b8] sm:$0xff]
    %v95 = vld [vmem:[#allocation2 + $0x1c0] sm:$0xff]
    %v96 = vld [vmem:[#allocation2 + $0x1c8] sm:$0xff]
    %v97 = vld [vmem:[#allocation2 + $0x1d0] sm:$0xff]
    %v98 = vld [vmem:[#allocation2 + $0x1d8] sm:$0xff]
    %v99 = vld [vmem:[#allocation2 + $0x1e0] sm:$0xff]
    %v100 = vld [vmem:[#allocation2 + $0x1e8] sm:$0xff]
    %v101 = vld [vmem:[#allocation2 + $0x1f0] sm:$0xff]
    %v102 = vld [vmem:[#allocation2 + $0x1f8] sm:$0xff]
    %v103 = vld [vmem:[#allocation2 + $0x200] sm:$0xff]
    %v104 = vld [vmem:[#allocation2 + $0x208] sm:$0xff]
    %v105 = vld [vmem:[#allocation2 + $0x210] sm:$0xff]
    %v106 = vld [vmem:[#allocation2 + $0x218] sm:$0xff]
    %v107 = vld [vmem:[#allocation2 + $0x220] sm:$0xff]
    %v108 = vld [vmem:[#allocation2 + $0x228] sm:$0xff]
    %v109 = vld [vmem:[#allocation2 + $0x230] sm:$0xff]
    %v110 = vld [vmem:[#allocation2 + $0x238] sm:$0xff]
    %v111 = vld [vmem:[#allocation2 + $0x240] sm:$0xff]
    %v112 = vld [vmem:[#allocation2 + $0x248] sm:$0xff]
    %v113 = vld [vmem:[#allocation2 + $0x250] sm:$0xff]
    %v114 = vld [vmem:[#allocation2 + $0x258] sm:$0xff]
    %v115 = vld [vmem:[#allocation2 + $0x260] sm:$0xff]
    %v116 = vld [vmem:[#allocation2 + $0x268] sm:$0xff]
    %v117 = vld [vmem:[#allocation2 + $0x270] sm:$0xff]
    %v118 = vld [vmem:[#allocation2 + $0x278] sm:$0xff]
    %v119 = vld [vmem:[#allocation2 + $0x280] sm:$0xff]
    %v120 = vld [vmem:[#allocation2 + $0x288] sm:$0xff]
    %v121 = vld [vmem:[#allocation2 + $0x290] sm:$0xff]
    %v122 = vld [vmem:[#allocation2 + $0x298] sm:$0xff]
    %v123 = vld [vmem:[#allocation2 + $0x2a0] sm:$0xff]
    %v124 = vld [vmem:[#allocation2 + $0x2a8] sm:$0xff]
    %v125 = vld [vmem:[#allocation2 + $0x2b0] sm:$0xff]
    %v126 = vld [vmem:[#allocation2 + $0x2b8] sm:$0xff]
    %v127 = vld [vmem:[#allocation2 + $0x2c0] sm:$0xff]
    %v128 = vld [vmem:[#allocation2 + $0x2c8] sm:$0xff]
    %v129 = vld [vmem:[#allocation2 + $0x2d0] sm:$0xff]
    %v130 = vld [vmem:[#allocation2 + $0x2d8] sm:$0xff]
    %v131 = vld [vmem:[#allocation2 + $0x2e0] sm:$0xff]
    %v132 = vld [vmem:[#allocation2 + $0x2e8] sm:$0xff]
    %v133 = vld [vmem:[#allocation2 + $0x2f0] sm:$0xff]
    %v134 = vld [vmem:[#allocation2 + $0x2f8] sm:$0xff]
    %v135 = vld [vmem:[#allocation2 + $0x300] sm:$0xff]
    %v136 = vld [vmem:[#allocation2 + $0x308] sm:$0xff]
    %v137 = vld [vmem:[%s2] sm:$0x1]
    %v139 = vlaneseq
    %v140 = vshrl.u32 %v139, 7
    %v141 = vsub.s32 0, %v140
    %v142 = vrot.slane %v137, %v141
    %vm144 = vcmask 130048
    %v146 = vsel %vm144, %v38, 0
    %148 = vmatprep.subr.mxu0 0.0
    %149 = vmatpush1.msra.mxu0 %v39
    %150 = vmatprep.subr.mxu0 0.0
    %151 = vmatpush1.msra.mxu0 %v40
    %152 = vmatprep.subr.mxu0 0.0
    %153 = vmatpush1.msra.mxu0 %v41
    %154 = vmatprep.subr.mxu0 0.0
    %155 = vmatpush1.msra.mxu0 %v42
    %156 = vmatprep.subr.mxu0 0.0
    %157 = vmatpush1.msra.mxu0 %v43
    %158 = vmatprep.subr.mxu0 0.0
    %159 = vmatpush1.msra.mxu0 %v44
    %160 = vmatprep.subr.mxu0 0.0
    %161 = vmatpush1.msra.mxu0 %v45
    %162 = vmatprep.subr.mxu0 0.0
    %163 = vmatpush1.msra.mxu0 %v46
    %164 = vmatprep.subr.mxu0 0.0
    %165 = vmatpush1.msra.mxu0 %v47
    %166 = vmatprep.subr.mxu0 0.0
    %167 = vmatpush1.msra.mxu0 %v48
    %168 = vmatprep.subr.mxu0 0.0
    %169 = vmatpush1.msra.mxu0 %v49
    %170 = vmatprep.subr.mxu0 0.0
    %171 = vmatpush1.msra.mxu0 %v50
    %172 = vmatprep.subr.mxu0 0.0
    %173 = vmatpush1.msra.mxu0 %v51
    %174 = vmatprep.subr.mxu0 0.0
    %175 = vmatpush1.msra.mxu0 %v52
    %176 = vmatprep.subr.mxu0 0.0
    %177 = vmatpush1.msra.mxu0 %v53
    %178 = vmatprep.subr.mxu0 0.0
    %179 = vmatpush1.msra.mxu0 %v54
    %180 = vmatprep.subr.mxu0 0.0
    %181 = vmatpush1.msra.mxu0 %v55
    %182 = vmatprep.subr.mxu0 0.0
    %183 = vmatpush1.msra.mxu0 %v56
    %184 = vmatprep.subr.mxu0 0.0
    %185 = vmatpush1.msra.mxu0 %v57
    %186 = vmatprep.subr.mxu0 0.0
    %187 = vmatpush1.msra.mxu0 %v58
    %188 = vmatprep.subr.mxu0 0.0
    %189 = vmatpush1.msra.mxu0 %v59
    %190 = vmatprep.subr.mxu0 0.0
    %191 = vmatpush1.msra.mxu0 %v60
    %192 = vmatprep.subr.mxu0 0.0
    %193 = vmatpush1.msra.mxu0 %v61
    %194 = vmatprep.subr.mxu0 0.0
    %195 = vmatpush1.msra.mxu0 %v62
    %196 = vmatprep.subr.mxu0 0.0
    %197 = vmatpush1.msra.mxu0 %v63
    %198 = vmatprep.subr.mxu0 0.0
    %199 = vmatpush1.msra.mxu0 %v64
    %200 = vmatprep.subr.mxu0 0.0
    %201 = vmatpush1.msra.mxu0 %v65
    %202 = vmatprep.subr.mxu0 0.0
    %203 = vmatpush1.msra.mxu0 %v66
    %204 = vmatprep.subr.mxu0 0.0
    %205 = vmatpush1.msra.mxu0 %v67
    %206 = vmatprep.subr.mxu0 0.0
    %207 = vmatpush1.msra.mxu0 %v68
    %208 = vmatprep.subr.mxu0 0.0
    %209 = vmatpush1.msra.mxu0 %v69
    %210 = vmatprep.subr.mxu0 0.0
    %211 = vmatpush1.msra.mxu0 %v70
    %212 = vmatprep.mubr.f32.mxu0 %v33
    %213 = vmatmul.mubr.f32.gmra.mrb[0].mxu0 %v32
    %v214 = vpop.f32.mrb[0].mxu0
    %v215 = vadd.f32 %v142, %v214
    %v216 = vpop.f32.mrb[0].mxu0
    %217 = vdwg.mxu0
    %218 = vmatprep.subr.mxu0 0.0
    %219 = vmatpush1.msra.mxu0 %v71
    %220 = vmatprep.subr.mxu0 0.0
    %221 = vmatpush1.msra.mxu0 %v72
    %222 = vmatprep.subr.mxu0 0.0
    %223 = vmatpush1.msra.mxu0 %v73
    %224 = vmatprep.subr.mxu0 0.0
    %225 = vmatpush1.msra.mxu0 %v74
    %226 = vmatprep.subr.mxu0 0.0
    %227 = vmatpush1.msra.mxu0 %v75
    %228 = vmatprep.subr.mxu0 0.0
    %229 = vmatpush1.msra.mxu0 %v76
    %230 = vmatprep.subr.mxu0 0.0
    %231 = vmatpush1.msra.mxu0 %v77
    %232 = vmatprep.subr.mxu0 0.0
    %233 = vmatpush1.msra.mxu0 %v78
    %234 = vmatprep.subr.mxu0 0.0
    %235 = vmatpush1.msra.mxu0 %v79
    %236 = vmatprep.subr.mxu0 0.0
    %237 = vmatpush1.msra.mxu0 %v80
    %238 = vmatprep.subr.mxu0 0.0
    %239 = vmatpush1.msra.mxu0 %v81
    %240 = vmatprep.subr.mxu0 0.0
    %241 = vmatpush1.msra.mxu0 %v82
    %242 = vmatprep.subr.mxu0 0.0
    %243 = vmatpush1.msra.mxu0 %v83
    %244 = vmatprep.subr.mxu0 0.0
    %245 = vmatpush1.msra.mxu0 %v84
    %246 = vmatprep.subr.mxu0 0.0
    %247 = vmatpush1.msra.mxu0 %v85
    %248 = vmatprep.subr.mxu0 0.0
    %249 = vmatpush1.msra.mxu0 %v86
    %250 = vmatprep.subr.mxu0 0.0
    %251 = vmatpush1.msra.mxu0 %v87
    %252 = vmatprep.subr.mxu0 0.0
    %253 = vmatpush1.msra.mxu0 %v88
    %254 = vmatprep.subr.mxu0 0.0
    %255 = vmatpush1.msra.mxu0 %v89
    %256 = vmatprep.subr.mxu0 0.0
    %257 = vmatpush1.msra.mxu0 %v90
    %258 = vmatprep.subr.mxu0 0.0
    %259 = vmatpush1.msra.mxu0 %v91
    %260 = vmatprep.subr.mxu0 0.0
    %261 = vmatpush1.msra.mxu0 %v92
    %262 = vmatprep.subr.mxu0 0.0
    %263 = vmatpush1.msra.mxu0 %v93
    %264 = vmatprep.subr.mxu0 0.0
    %265 = vmatpush1.msra.mxu0 %v94
    %266 = vmatprep.subr.mxu0 0.0
    %267 = vmatpush1.msra.mxu0 %v95
    %268 = vmatprep.subr.mxu0 0.0
    %269 = vmatpush1.msra.mxu0 %v96
    %270 = vmatprep.subr.mxu0 0.0
    %271 = vmatpush1.msra.mxu0 %v97
    %272 = vmatprep.subr.mxu0 0.0
    %273 = vmatpush1.msra.mxu0 %v98
    %274 = vmatprep.subr.mxu0 0.0
    %275 = vmatpush1.msra.mxu0 %v99
    %276 = vmatprep.subr.mxu0 0.0
    %277 = vmatpush1.msra.mxu0 %v100
    %278 = vmatprep.subr.mxu0 0.0
    %279 = vmatpush1.msra.mxu0 %v101
    %280 = vmatprep.subr.mxu0 0.0
    %281 = vmatpush1.msra.mxu0 %v102
    %282 = vmatprep.mubr.f32.mxu0 %v35
    %283 = vmatmul.mubr.f32.gmra.mrb[0].mxu0 %v34
    %v284 = vpop.f32.mrb[0].mxu0
    %v285 = vadd.f32 %v215, %v284
    %v286 = vpop.f32.mrb[0].mxu0
    %287 = vdwg.mxu0
    %288 = vmatprep.subr.mxu0 0.0
    %289 = vmatpush1.msra.mxu0 %v103
    %290 = vmatprep.subr.mxu0 0.0
    %291 = vmatpush1.msra.mxu0 %v104
    %292 = vmatprep.subr.mxu0 0.0
    %293 = vmatpush1.msra.mxu0 %v105
    %294 = vmatprep.subr.mxu0 0.0
    %295 = vmatpush1.msra.mxu0 %v106
    %296 = vmatprep.subr.mxu0 0.0
    %297 = vmatpush1.msra.mxu0 %v107
    %298 = vmatprep.subr.mxu0 0.0
    %299 = vmatpush1.msra.mxu0 %v108
    %300 = vmatprep.subr.mxu0 0.0
    %301 = vmatpush1.msra.mxu0 %v109
    %302 = vmatprep.subr.mxu0 0.0
    %303 = vmatpush1.msra.mxu0 %v110
    %304 = vmatprep.subr.mxu0 0.0
    %305 = vmatpush1.msra.mxu0 %v111
    %306 = vmatprep.subr.mxu0 0.0
    %307 = vmatpush1.msra.mxu0 %v112
    %308 = vmatprep.subr.mxu0 0.0
    %309 = vmatpush1.msra.mxu0 %v113
    %310 = vmatprep.subr.mxu0 0.0
    %311 = vmatpush1.msra.mxu0 %v114
    %312 = vmatprep.subr.mxu0 0.0
    %313 = vmatpush1.msra.mxu0 %v115
    %314 = vmatprep.subr.mxu0 0.0
    %315 = vmatpush1.msra.mxu0 %v116
    %316 = vmatprep.subr.mxu0 0.0
    %317 = vmatpush1.msra.mxu0 %v117
    %318 = vmatprep.subr.mxu0 0.0
    %319 = vmatpush1.msra.mxu0 %v118
    %320 = vmatprep.subr.mxu0 0.0
    %321 = vmatpush1.msra.mxu0 %v119
    %322 = vmatprep.subr.mxu0 0.0
    %323 = vmatpush1.msra.mxu0 %v120
    %324 = vmatprep.subr.mxu0 0.0
    %325 = vmatpush1.msra.mxu0 %v121
    %326 = vmatprep.subr.mxu0 0.0
    %327 = vmatpush1.msra.mxu0 %v122
    %328 = vmatprep.subr.mxu0 0.0
    %329 = vmatpush1.msra.mxu0 %v123
    %330 = vmatprep.subr.mxu0 0.0
    %331 = vmatpush1.msra.mxu0 %v124
    %332 = vmatprep.subr.mxu0 0.0
    %333 = vmatpush1.msra.mxu0 %v125
    %334 = vmatprep.subr.mxu0 0.0
    %335 = vmatpush1.msra.mxu0 %v126
    %336 = vmatprep.subr.mxu0 0.0
    %337 = vmatpush1.msra.mxu0 %v127
    %338 = vmatprep.subr.mxu0 0.0
    %339 = vmatpush1.msra.mxu0 %v128
    %340 = vmatprep.subr.mxu0 0.0
    %341 = vmatpush1.msra.mxu0 %v129
    %342 = vmatprep.subr.mxu0 0.0
    %343 = vmatpush1.msra.mxu0 %v130
    %344 = vmatprep.subr.mxu0 0.0
    %345 = vmatpush1.msra.mxu0 %v131
    %346 = vmatprep.subr.mxu0 0.0
    %347 = vmatpush1.msra.mxu0 %v132
    %348 = vmatprep.subr.mxu0 0.0
    %349 = vmatpush1.msra.mxu0 %v133
    %350 = vmatprep.subr.mxu0 0.0
    %351 = vmatpush1.msra.mxu0 %v134
    %352 = vmatprep.mubr.f32.mxu0 %v37
    %353 = vmatmul.mubr.f32.gmra.mrb[0].mxu0 %v36
    %v354 = vpop.f32.mrb[0].mxu0
    %v355 = vadd.f32 %v285, %v354
    %v356 = vpop.f32.mrb[0].mxu0
    %357 = vdwg.mxu0
    %358 = vmatprep.subr.mxu0 0.0
    %359 = vmatpush1.msra.mxu0 %v135
    %360 = vmatprep.subr.mxu0 0.0
    %361 = vmatpush1.msra.mxu0 %v136
    %362 = vmatprep.subr.mxu0 0.0
    %363 = vmatpush1.msra.mxu0 0.0
    %364 = vmatprep.subr.mxu0 0.0
    %365 = vmatpush1.msra.mxu0 0.0
    %366 = vmatprep.subr.mxu0 0.0
    %367 = vmatpush1.msra.mxu0 0.0
    %368 = vmatprep.subr.mxu0 0.0
    %369 = vmatpush1.msra.mxu0 0.0
    %370 = vmatprep.subr.mxu0 0.0
    %371 = vmatpush1.msra.mxu0 0.0
    %372 = vmatprep.subr.mxu0 0.0
    %373 = vmatpush1.msra.mxu0 0.0
    %374 = vmatprep.subr.mxu0 0.0
    %375 = vmatpush1.msra.mxu0 0.0
    %376 = vmatprep.subr.mxu0 0.0
    %377 = vmatpush1.msra.mxu0 0.0
    %378 = vmatprep.subr.mxu0 0.0
    %379 = vmatpush1.msra.mxu0 0.0
    %380 = vmatprep.subr.mxu0 0.0
    %381 = vmatpush1.msra.mxu0 0.0
    %382 = vmatprep.subr.mxu0 0.0
    %383 = vmatpush1.msra.mxu0 0.0
    %384 = vmatprep.subr.mxu0 0.0
    %385 = vmatpush1.msra.mxu0 0.0
    %386 = vmatprep.subr.mxu0 0.0
    %387 = vmatpush1.msra.mxu0 0.0
    %388 = vmatprep.subr.mxu0 0.0
    %389 = vmatpush1.msra.mxu0 0.0
    %390 = vmatprep.subr.mxu0 0.0
    %391 = vmatpush1.msra.mxu0 0.0
    %392 = vmatprep.subr.mxu0 0.0
    %393 = vmatpush1.msra.mxu0 0.0
    %394 = vmatprep.subr.mxu0 0.0
    %395 = vmatpush1.msra.mxu0 0.0
    %396 = vmatprep.subr.mxu0 0.0
    %397 = vmatpush1.msra.mxu0 0.0
    %398 = vmatprep.subr.mxu0 0.0
    %399 = vmatpush1.msra.mxu0 0.0
    %400 = vmatprep.subr.mxu0 0.0
    %401 = vmatpush1.msra.mxu0 0.0
    %402 = vmatprep.subr.mxu0 0.0
    %403 = vmatpush1.msra.mxu0 0.0
    %404 = vmatprep.subr.mxu0 0.0
    %405 = vmatpush1.msra.mxu0 0.0
    %406 = vmatprep.subr.mxu0 0.0
    %407 = vmatpush1.msra.mxu0 0.0
    %408 = vmatprep.subr.mxu0 0.0
    %409 = vmatpush1.msra.mxu0 0.0
    %410 = vmatprep.subr.mxu0 0.0
    %411 = vmatpush1.msra.mxu0 0.0
    %412 = vmatprep.subr.mxu0 0.0
    %413 = vmatpush1.msra.mxu0 0.0
    %414 = vmatprep.subr.mxu0 0.0
    %415 = vmatpush1.msra.mxu0 0.0
    %416 = vmatprep.subr.mxu0 0.0
    %417 = vmatpush1.msra.mxu0 0.0
    %418 = vmatprep.subr.mxu0 0.0
    %419 = vmatpush1.msra.mxu0 0.0
    %420 = vmatprep.subr.mxu0 0.0
    %421 = vmatpush1.msra.mxu0 0.0
    %422 = vmatprep.mubr.f32.mxu0 0.0
    %423 = vmatmul.mubr.f32.gmra.mrb[0].mxu0 %v146
    %v424 = vpop.f32.mrb[0].mxu0
    %v425 = vadd.f32 %v355, %v424
    %v426 = vpop.f32.mrb[0].mxu0
    %427 = vdwg.mxu0
    %v428 = vand.u32 2147483647, %v425
    %v429 = vld [vmem:[%s3] sm:$0xff]
    %v430 = vld [vmem:[%s3 + $0x8] sm:$0xff]
    %v431 = vld [vmem:[%s3 + $0x10] sm:$0xff]
    %v432 = vld [vmem:[%s3 + $0x18] sm:$0xff]
    %v433 = vld [vmem:[%s3 + $0x20] sm:$0xff]
    %v434 = vld [vmem:[%s3 + $0x28] sm:$0xff]
    %v435 = vld [vmem:[%s3 + $0x30] sm:$0xff]
    %v436 = vld [vmem:[%s3 + $0x38] sm:$0xff]
    %v437 = vld [vmem:[%s3 + $0x40] sm:$0xff]
    %v438 = vld [vmem:[%s3 + $0x48] sm:$0xff]
    %v439 = vld [vmem:[%s3 + $0x50] sm:$0xff]
    %v440 = vld [vmem:[%s3 + $0x58] sm:$0xff]
    %v441 = vld [vmem:[%s3 + $0x60] sm:$0xff]
    %v442 = vld [vmem:[%s3 + $0x68] sm:$0xff]
    %v443 = vld [vmem:[%s3 + $0x70] sm:$0xff]
    %v444 = vld [vmem:[%s3 + $0x78] sm:$0xff]
    %445 = vmatprep.subr.mxu0 0.0
    %446 = vmatpush1.msra.mxu0 %v429
    %447 = vmatprep.subr.mxu0 0.0
    %448 = vmatpush1.msra.mxu0 %v430
    %449 = vmatprep.subr.mxu0 0.0
    %450 = vmatpush1.msra.mxu0 %v431
    %451 = vmatprep.subr.mxu0 0.0
    %452 = vmatpush1.msra.mxu0 %v432
    %453 = vmatprep.subr.mxu0 0.0
    %454 = vmatpush1.msra.mxu0 %v433
    %455 = vmatprep.subr.mxu0 0.0
    %456 = vmatpush1.msra.mxu0 %v434
    %457 = vmatprep.subr.mxu0 0.0
    %458 = vmatpush1.msra.mxu0 %v435
    %459 = vmatprep.subr.mxu0 0.0
    %460 = vmatpush1.msra.mxu0 %v436
    %461 = vmatprep.subr.mxu0 0.0
    %462 = vmatpush1.msra.mxu0 %v437
    %463 = vmatprep.subr.mxu0 0.0
    %464 = vmatpush1.msra.mxu0 %v438
    %465 = vmatprep.subr.mxu0 0.0
    %466 = vmatpush1.msra.mxu0 %v439
    %467 = vmatprep.subr.mxu0 0.0
    %468 = vmatpush1.msra.mxu0 %v440
    %469 = vmatprep.subr.mxu0 0.0
    %470 = vmatpush1.msra.mxu0 %v441
    %471 = vmatprep.subr.mxu0 0.0
    %472 = vmatpush1.msra.mxu0 %v442
    %473 = vmatprep.subr.mxu0 0.0
    %474 = vmatpush1.msra.mxu0 %v443
    %475 = vmatprep.subr.mxu0 0.0
    %476 = vmatpush1.msra.mxu0 %v444
    %477 = vmatprep.subr.mxu0 0.0
    %478 = vmatpush1.msra.mxu0 0.0
    %479 = vmatprep.subr.mxu0 0.0
    %480 = vmatpush1.msra.mxu0 0.0
    %481 = vmatprep.subr.mxu0 0.0
    %482 = vmatpush1.msra.mxu0 0.0
    %483 = vmatprep.subr.mxu0 0.0
    %484 = vmatpush1.msra.mxu0 0.0
    %485 = vmatprep.subr.mxu0 0.0
    %486 = vmatpush1.msra.mxu0 0.0
    %487 = vmatprep.subr.mxu0 0.0
    %488 = vmatpush1.msra.mxu0 0.0
    %489 = vmatprep.subr.mxu0 0.0
    %490 = vmatpush1.msra.mxu0 0.0
    %491 = vmatprep.subr.mxu0 0.0
    %492 = vmatpush1.msra.mxu0 0.0
    %493 = vmatprep.subr.mxu0 0.0
    %494 = vmatpush1.msra.mxu0 0.0
    %495 = vmatprep.subr.mxu0 0.0
    %496 = vmatpush1.msra.mxu0 0.0
    %497 = vmatprep.subr.mxu0 0.0
    %498 = vmatpush1.msra.mxu0 0.0
    %499 = vmatprep.subr.mxu0 0.0
    %500 = vmatpush1.msra.mxu0 0.0
    %501 = vmatprep.subr.mxu0 0.0
    %502 = vmatpush1.msra.mxu0 0.0
    %503 = vmatprep.subr.mxu0 0.0
    %504 = vmatpush1.msra.mxu0 0.0
    %505 = vmatprep.subr.mxu0 0.0
    %506 = vmatpush1.msra.mxu0 0.0
    %507 = vmatprep.subr.mxu0 0.0
    %508 = vmatpush1.msra.mxu0 0.0
    %509 = vmatprep.mubr.f32.mxu0 0.0
    %510 = vmatmul.mubr.f32.gmra.mrb[0].mxu0 %v428
    %v511 = vpop.f32.mrb[0].mxu0
    %v512 = vadd.f32 0.0, %v511
    %v513 = vpop.f32.mrb[0].mxu0
    %514 = vdwg.mxu0
    %vm515 = vcmask 80896
    %516 = vst.msk [vmem:[#allocation5] sm:$0xff] %vm515, %v512
    // Predicated region
    $region22: #{tpu_custom_call.1} parent=1 // pred_check
      _
    $region23: #{tpu_custom_call.1} parent=1 // pred_check_branch
      %518 = sbr.rel (0) target = $region25
    $region24: #{tpu_custom_call.1} parent=1 // pred_region
      %s520 = ssub.s32 128, 128
      %521 = vsyncadd [#allocation4], %s520
      %s523 = sshll.u32 [#allocation5], 4
      %s524 = int_to_ptr.vmem [resolvable:$true] %s523
      %526 = dma.vmem_to_hbm [thread:$0]  %s524, 128, %s4, [#allocation4]
    $region25: #{tpu_custom_call.1} parent=1 // pred_fallthru
      _
    // Predicated region
    $region26: #{tpu_custom_call.1} parent=1 // pred_check
      _
    $region27: #{tpu_custom_call.1} parent=1 // pred_check_branch
      %528 = sbr.rel (0) target = $region29
    $region28: #{tpu_custom_call.1} parent=1 // pred_region
      %529 = dma.done [#allocation4], 128
    $region29: #{tpu_custom_call.1} parent=1 // pred_fallthru
      _
    %530 = vsyncpa [#allocation3], 1
    %531 = vsyncpa [#allocation4], 1

</llo_original>
